<compile_context>
chip_gen: v7x
topology: tpu7x:2x2x1
jax: 0.10.0
libtpu: 0.0.40
codegen_flags: <defaults>
</compile_context>

<pallas_src>
import jax
import jax.numpy as jnp
from jax.experimental import pallas as pl
from jax.experimental.pallas import tpu as pltpu

_LANE = 128
_SUB = 8
_NACC = 8                       # independent accumulator chains (VPU latency hiding)
_ROW_GRAN = _SUB * _NACC        # 64: row granularity of a kernel tile
_TARGET_BLOCK_BYTES = 4 * 1024 * 1024   # f32 working set per input per grid step
_VMEM_LIMIT = 48 * 1024 * 1024


def _sumsq_pallas(a2, b2, tile_rows):
    """sum((a2 - b2)^2) over a (rows, 128) pair via a tiled Pallas reduction.

    The grid walks row-blocks of `tile_rows`; a VMEM-resident (NACC, 8, 128)
    f32 accumulator (the kernel output, constant block index along the
    reduction axis) is updated with pure VPU adds each step.  A ragged last
    block (rows % tile_rows != 0) is masked in-kernel — Pallas does not zero
    the out-of-bounds rows of a non-dividing last block.
    """
    rows = a2.shape[0]
    num_steps = pl.cdiv(rows, tile_rows)
    valid_last = rows - (num_steps - 1) * tile_rows   # valid rows in last block
    need_mask = valid_last != tile_rows
    groups = tile_rows // (_SUB * _NACC)

    def kernel(o_ref, t_ref, out_ref):
        step = pl.program_id(0)

        @pl.when(step == 0)
        def _():
            out_ref[...] = jnp.zeros_like(out_ref)

        def accumulate(masked):
            d = o_ref[...].astype(jnp.float32) - t_ref[...].astype(jnp.float32)
            sq = d * d
            if masked:
                # Zero the garbage rows of the padded last block.
                row = jax.lax.broadcasted_iota(jnp.int32, sq.shape, 0)
                sq = jnp.where(row < valid_last, sq, 0.0)
            # (tile_rows,128) -> (groups, NACC, 8, 128): pure vreg-tile
            # regrouping; summing axis 0 is NACC independent chains of vreg
            # adds on the VPU (no XLU reduce, no serialized single chain).
            out_ref[...] += jnp.sum(
                sq.reshape(groups, _NACC, _SUB, sq.shape[1]), axis=0)

        if need_mask:
            @pl.when(step < num_steps - 1)
            def _():
                accumulate(False)

            @pl.when(step == num_steps - 1)
            def _():
                accumulate(True)
        else:
            accumulate(False)

    partials = pl.pallas_call(
        kernel,
        out_shape=jax.ShapeDtypeStruct((_NACC, _SUB, _LANE), jnp.float32),
        grid_spec=pltpu.PrefetchScalarGridSpec(
            num_scalar_prefetch=0,
            grid=(num_steps,),
            in_specs=[
                pl.BlockSpec((tile_rows, _LANE), lambda i: (i, 0)),
                pl.BlockSpec((tile_rows, _LANE), lambda i: (i, 0)),
            ],
            out_specs=pl.BlockSpec((_NACC, _SUB, _LANE), lambda i: (0, 0, 0)),
        ),
        compiler_params=pltpu.CompilerParams(
            dimension_semantics=("arbitrary",),
            vmem_limit_bytes=_VMEM_LIMIT,
        ),
    )(a2, b2)
    # Single tiny (8*8*128) cross-lane reduce + sqrt happen outside the kernel.
    return jnp.sum(partials)


@jax.jit
def _l2_norm_diff(output, truth):
    """Returns ||output - truth||_2 (Frobenius norm over all elements)."""
    common = jnp.result_type(output.dtype, truth.dtype)
    a = output.reshape(-1)
    b = truth.reshape(-1)
    if a.dtype != common:
        a = a.astype(common)
    if b.dtype != common:
        b = b.astype(common)

    n = a.size
    m = n // _LANE               # number of full 128-lane rows
    rem = n - m * _LANE          # < 128 trailing elements

    if m >= _ROW_GRAN:
        # Bound the in-kernel f32 working set regardless of input dtype.
        itemsize = max(jnp.dtype(common).itemsize, 4)
        target_rows = max(
            _ROW_GRAN,
            (_TARGET_BLOCK_BYTES // (_LANE * itemsize)) // _ROW_GRAN * _ROW_GRAN)
        tile_rows = min(target_rows, (m // _ROW_GRAN) * _ROW_GRAN)

        if rem == 0:
            a2 = a.reshape(m, _LANE)             # pure metadata reshape, no copy
            b2 = b.reshape(m, _LANE)
        else:
            # Only the <128-element lane remainder leaves the kernel path.
            a2 = a[: m * _LANE].reshape(m, _LANE)
            b2 = b[: m * _LANE].reshape(m, _LANE)

        ksum = _sumsq_pallas(a2, b2, tile_rows)

        if rem:
            ra = a[m * _LANE:].astype(jnp.float32)
            rb = b[m * _LANE:].astype(jnp.float32)
            rd = ra - rb
            ksum = ksum + jnp.sum(rd * rd)
    else:
        # Tiny input: zero-pad to one 64x128 block (negligible copy at this
        # size) so the kernel still runs; padded zeros contribute nothing.
        pad = _ROW_GRAN * _LANE - n
        a2 = jnp.pad(a, (0, pad)).reshape(_ROW_GRAN, _LANE)
        b2 = jnp.pad(b, (0, pad)).reshape(_ROW_GRAN, _LANE)
        ksum = _sumsq_pallas(a2, b2, _ROW_GRAN)

    return jnp.sqrt(ksum)


class TOSMSE:
    """JAX/Pallas port of the PyTorch TOSMSE module (no parameters).

    The PyTorch forward prints torch.norm(output - truth). verbose=True
    mirrors that; set verbose=False in a training loop to avoid forcing a
    device->host sync on every call (the norm is returned either way).
    """

    def __init__(self, verbose=True):
        self.verbose = verbose

    def __call__(self, output, truth):
        norm = _l2_norm_diff(output, truth)
        if self.verbose:
            print(norm)
        return norm  # PyTorch forward returns None; returned here for testing.


if __name__ == "__main__":
    key = jax.random.PRNGKey(0)
    k1, k2 = jax.random.split(key)

    # 1) Small NCHW-style tensors (tiny-input / padded path).
    output = jax.random.normal(k1, (2, 4, 16, 16), dtype=jnp.float32)
    truth = jax.random.normal(k2, (2, 4, 16, 16), dtype=jnp.float32)
    loss_mod = TOSMSE(verbose=False)
    norm = jax.block_until_ready(loss_mod(output, truth))
    ref = jnp.linalg.norm((output - truth).reshape(-1))
    assert jnp.allclose(norm, ref, rtol=1e-5, atol=1e-5), (norm, ref)

    # 2) Ragged small size (still tiny-input path, odd element count).
    k3, k4 = jax.random.split(k2)
    o2 = jax.random.normal(k3, (3, 5, 17, 13), dtype=jnp.float32)
    t2 = jax.random.normal(k4, (3, 5, 17, 13), dtype=jnp.float32)
    n2 = jax.block_until_ready(_l2_norm_diff(o2, t2))
    ref2 = jnp.linalg.norm((o2 - t2).reshape(-1))
    assert jnp.allclose(n2, ref2, rtol=1e-5, atol=1e-5), (n2, ref2)

    # 3) Larger ragged size: exercises the no-copy tiled path, the in-kernel
    #    masked last block, and the <128-element jnp lane tail.
    k5, k6 = jax.random.split(k4)
    o3 = jax.random.normal(k5, (2, 3, 70, 67), dtype=jnp.float32)
    t3 = jax.random.normal(k6, (2, 3, 70, 67), dtype=jnp.float32)
    n3 = jax.block_until_ready(_l2_norm_diff(o3, t3))
    ref3 = jnp.linalg.norm((o3 - t3).reshape(-1))
    assert jnp.allclose(n3, ref3, rtol=1e-5, atol=1e-5), (n3, ref3)

    # 4) Exactly 128-lane / 64-row aligned size (no mask, no tail, no slice).
    k7, k8 = jax.random.split(k6)
    o4 = jax.random.normal(k7, (1, 1, 64, 128), dtype=jnp.float32)
    t4 = jax.random.normal(k8, (1, 1, 64, 128), dtype=jnp.float32)
    n4 = jax.block_until_ready(_l2_norm_diff(o4, t4))
    ref4 = jnp.linalg.norm((o4 - t4).reshape(-1))
    assert jnp.allclose(n4, ref4, rtol=1e-5, atol=1e-5), (n4, ref4)

    print("KERNEL_OK")
</pallas_src>

<mosaic_0001>
module attributes {stable_mosaic.version = 11 : i64} {
  func.func @kernel(%arg0: i32, %arg1: memref<64x128xf32, #tpu.memory_space<vmem>>, %arg2: memref<64x128xf32, #tpu.memory_space<vmem>>, %arg3: memref<8x8x128xf32, #tpu.memory_space<vmem>>) attributes {dimension_semantics = [#tpu.dimension_semantics<arbitrary>], iteration_bounds = array<i64: 1>, scalar_prefetch = 0 : i64, scratch_operands = 0 : i64, tpu.core_type = #tpu.core_type<tc>, window_params = [{transform_indices = @transform_0, window_bounds = array<i64: 64, 128>}, {transform_indices = @transform_1, window_bounds = array<i64: 64, 128>}, {pipeline_mode = #tpu.pipeline_mode<synchronous>, transform_indices = @transform_2, window_bounds = array<i64: 8, 8, 128>}]} {
    %c0_i32 = arith.constant 0 : i32
    %0 = arith.cmpi eq, %arg0, %c0_i32 : i32
    %1 = arith.extui %0 : i1 to i32
    %c0_i32_0 = arith.constant 0 : i32
    %2 = arith.cmpi ne, %1, %c0_i32_0 : i32
    scf.if %2 {
      %cst_10 = arith.constant 0.000000e+00 : f32
      %12 = vector.broadcast %cst_10 : f32 to vector<8x8x128xf32>
      %c0_11 = arith.constant 0 : index
      %c0_12 = arith.constant 0 : index
      %c0_13 = arith.constant 0 : index
      %13 = vector.load %arg3[%c0_11, %c0_12, %c0_13] : memref<8x8x128xf32, #tpu.memory_space<vmem>>, vector<8x8x128xf32>
      tpu.vector_store %arg3[%c0_11, %c0_12, %c0_13], %12 {strides = array<i32>} : memref<8x8x128xf32, #tpu.memory_space<vmem>>, vector<8x8x128xf32>,
    } else {
    }
    %c0 = arith.constant 0 : index
    %c0_1 = arith.constant 0 : index
    %3 = vector.load %arg1[%c0, %c0_1] : memref<64x128xf32, #tpu.memory_space<vmem>>, vector<64x128xf32>
    %c0_2 = arith.constant 0 : index
    %c0_3 = arith.constant 0 : index
    %4 = vector.load %arg2[%c0_2, %c0_3] : memref<64x128xf32, #tpu.memory_space<vmem>>, vector<64x128xf32>
    %5 = arith.subf %3, %4 : vector<64x128xf32>
    %6 = arith.mulf %5, %5 : vector<64x128xf32>
    %c0_4 = arith.constant 0 : index
    %c0_5 = arith.constant 0 : index
    %c0_6 = arith.constant 0 : index
    %7 = vector.load %arg3[%c0_4, %c0_5, %c0_6] : memref<8x8x128xf32, #tpu.memory_space<vmem>>, vector<8x8x128xf32>
    %8 = vector.shape_cast %6 : vector<64x128xf32> to vector<1x8x8x128xf32>
    %cst = arith.constant dense<0.000000e+00> : vector<8x8x128xf32>
    %9 = vector.multi_reduction <add>, %8, %cst [0] : vector<1x8x8x128xf32> to vector<8x8x128xf32>
    %10 = arith.addf %7, %9 : vector<8x8x128xf32>
    %c0_7 = arith.constant 0 : index
    %c0_8 = arith.constant 0 : index
    %c0_9 = arith.constant 0 : index
    %11 = vector.load %arg3[%c0_7, %c0_8, %c0_9] : memref<8x8x128xf32, #tpu.memory_space<vmem>>, vector<8x8x128xf32>
    tpu.vector_store %arg3[%c0_7, %c0_8, %c0_9], %10 {strides = array<i32>} : memref<8x8x128xf32, #tpu.memory_space<vmem>>, vector<8x8x128xf32>,
    return
  }
  func.func @transform_0(%arg0: i32) -> (i32, i32) {
    %c0_i32 = arith.constant 0 : i32
    %c0_i32_0 = arith.constant 0 : i32
    return %arg0, %c0_i32 : i32, i32
  }
  func.func @transform_1(%arg0: i32) -> (i32, i32) {
    %c0_i32 = arith.constant 0 : i32
    %c0_i32_0 = arith.constant 0 : i32
    return %arg0, %c0_i32 : i32, i32
  }
  func.func @transform_2(%arg0: i32) -> (i32, i32, i32) {
    %c0_i32 = arith.constant 0 : i32
    %c0_i32_0 = arith.constant 0 : i32
    %c0_i32_1 = arith.constant 0 : i32
    %c0_i32_2 = arith.constant 0 : i32
    return %c0_i32, %c0_i32_0, %c0_i32_1 : i32, i32, i32
  }
}

</mosaic_0001>

<llo_original>
// kernel: _l2_norm_diff.1
$region0: #{_l2_norm_diff.1}
  #allocation0 [shape = 'u32[]', space=smem, size = 0x4, offset = 0x4, fixed_abs, tag = 'smem constant byte address 0x4 - core index']
  #allocation1 [shape = 'u32[144,128]{1,0:T(1,128)}', space=vmem, size = 0x12000, scoped, tag = 'internal scratch']
  %s0 = inlined_call_operand.vmem [shape: f32[64,128], index: 0, kind: input, shape index: {}]
  %s1 = inlined_call_operand.vmem [shape: f32[64,128], index: 1, kind: input, shape index: {}]
  %s2 = inlined_call_operand.vmem [shape: f32[8,8,128], index: 2, kind: output, shape index: {}]
  %s3 = sld [smem:[#allocation0]]
  $region22: #{_l2_norm_diff.1} parent=0
    _
  %s5 = ssub.s32 1, %s3
  %s6 = scalar_select 0, %s5, %s3
  // Predicated region
  $region2: #{_l2_norm_diff.1} parent=0 // pred_check
    _
  $region3: #{_l2_norm_diff.1} parent=0 // pred_check_branch
    %8 = sbr.rel (0) target = $region5
  $region4: #{_l2_norm_diff.1} parent=0 // pred_region
    _
  $region5: #{_l2_norm_diff.1} parent=0 // pred_fallthru
    _
  // Predicated region
  $region6: #{_l2_norm_diff.1} parent=0 // pred_check
    _
  $region7: #{_l2_norm_diff.1} parent=0 // pred_check_branch
    %10 = sbr.rel (0) target = $region9
  $region8: #{_l2_norm_diff.1} parent=0 // pred_region
    _
  $region9: #{_l2_norm_diff.1} parent=0 // pred_fallthru
    _
  %p11 = scmp.eq.s32.totalorder 0, 0
  // Predicated region
  $region10: #{_l2_norm_diff.1} parent=0 // pred_check
    %p12 = pneg %p11
  $region11: #{_l2_norm_diff.1} parent=0 // pred_check_branch
    %14 = sbr.rel (%p12) target = $region13
  $region12: #{_l2_norm_diff.1} parent=0 // pred_region
    %15 = vst [vmem:[%s2] sm:$0xff] 0.0
    %16 = vst [vmem:[%s2 + $0x8] sm:$0xff] 0.0
    %17 = vst [vmem:[%s2 + $0x10] sm:$0xff] 0.0
    %18 = vst [vmem:[%s2 + $0x18] sm:$0xff] 0.0
    %19 = vst [vmem:[%s2 + $0x20] sm:$0xff] 0.0
    %20 = vst [vmem:[%s2 + $0x28] sm:$0xff] 0.0
    %21 = vst [vmem:[%s2 + $0x30] sm:$0xff] 0.0
    %22 = vst [vmem:[%s2 + $0x38] sm:$0xff] 0.0
  $region13: #{_l2_norm_diff.1} parent=0 // pred_fallthru
    _
  %v23 = vld [vmem:[%s0] sm:$0xff]
  %v24 = vld [vmem:[%s0 + $0x8] sm:$0xff]
  %v25 = vld [vmem:[%s0 + $0x10] sm:$0xff]
  %v26 = vld [vmem:[%s0 + $0x18] sm:$0xff]
  %v27 = vld [vmem:[%s0 + $0x20] sm:$0xff]
  %v28 = vld [vmem:[%s0 + $0x28] sm:$0xff]
  %v29 = vld [vmem:[%s0 + $0x30] sm:$0xff]
  %v30 = vld [vmem:[%s0 + $0x38] sm:$0xff]
  %v31 = vld [vmem:[%s1] sm:$0xff]
  %v32 = vld [vmem:[%s1 + $0x8] sm:$0xff]
  %v33 = vld [vmem:[%s1 + $0x10] sm:$0xff]
  %v34 = vld [vmem:[%s1 + $0x18] sm:$0xff]
  %v35 = vld [vmem:[%s1 + $0x20] sm:$0xff]
  %v36 = vld [vmem:[%s1 + $0x28] sm:$0xff]
  %v37 = vld [vmem:[%s1 + $0x30] sm:$0xff]
  %v38 = vld [vmem:[%s1 + $0x38] sm:$0xff]
  %v39 = vsub.f32 %v23, %v31
  %v40 = vsub.f32 %v24, %v32
  %v41 = vsub.f32 %v25, %v33
  %v42 = vsub.f32 %v26, %v34
  %v43 = vsub.f32 %v27, %v35
  %v44 = vsub.f32 %v28, %v36
  %v45 = vsub.f32 %v29, %v37
  %v46 = vsub.f32 %v30, %v38
  %v47 = vmul.f32 %v39, %v39
  %v48 = vmul.f32 %v40, %v40
  %v49 = vmul.f32 %v41, %v41
  %v50 = vmul.f32 %v42, %v42
  %v51 = vmul.f32 %v43, %v43
  %v52 = vmul.f32 %v44, %v44
  %v53 = vmul.f32 %v45, %v45
  %v54 = vmul.f32 %v46, %v46
  %v55 = vld [vmem:[%s2] sm:$0xff]
  %v56 = vld [vmem:[%s2 + $0x8] sm:$0xff]
  %v57 = vld [vmem:[%s2 + $0x10] sm:$0xff]
  %v58 = vld [vmem:[%s2 + $0x18] sm:$0xff]
  %v59 = vld [vmem:[%s2 + $0x20] sm:$0xff]
  %v60 = vld [vmem:[%s2 + $0x28] sm:$0xff]
  %v61 = vld [vmem:[%s2 + $0x30] sm:$0xff]
  %v62 = vld [vmem:[%s2 + $0x38] sm:$0xff]
  %v63 = vadd.f32 %v47, 0.0
  %v64 = vadd.f32 %v48, 0.0
  %v65 = vadd.f32 %v49, 0.0
  %v66 = vadd.f32 %v50, 0.0
  %v67 = vadd.f32 %v51, 0.0
  %v68 = vadd.f32 %v52, 0.0
  %v69 = vadd.f32 %v53, 0.0
  %v70 = vadd.f32 %v54, 0.0
  %v71 = vadd.f32 %v55, %v63
  %v72 = vadd.f32 %v56, %v64
  %v73 = vadd.f32 %v57, %v65
  %v74 = vadd.f32 %v58, %v66
  %v75 = vadd.f32 %v59, %v67
  %v76 = vadd.f32 %v60, %v68
  %v77 = vadd.f32 %v61, %v69
  %v78 = vadd.f32 %v62, %v70
  %79 = vst [vmem:[%s2] sm:$0xff] %v71
  %80 = vst [vmem:[%s2 + $0x8] sm:$0xff] %v72
  %81 = vst [vmem:[%s2 + $0x10] sm:$0xff] %v73
  %82 = vst [vmem:[%s2 + $0x18] sm:$0xff] %v74
  %83 = vst [vmem:[%s2 + $0x20] sm:$0xff] %v75
  %84 = vst [vmem:[%s2 + $0x28] sm:$0xff] %v76
  %85 = vst [vmem:[%s2 + $0x30] sm:$0xff] %v77
  %86 = vst [vmem:[%s2 + $0x38] sm:$0xff] %v78
  // Predicated region
  $region14: #{_l2_norm_diff.1} parent=0 // pred_check
    _
  $region15: #{_l2_norm_diff.1} parent=0 // pred_check_branch
    %88 = sbr.rel (0) target = $region17
  $region16: #{_l2_norm_diff.1} parent=0 // pred_region
    _
  $region17: #{_l2_norm_diff.1} parent=0 // pred_fallthru
    _
  // Predicated region
  $region18: #{_l2_norm_diff.1} parent=0 // pred_check
    _
  $region19: #{_l2_norm_diff.1} parent=0 // pred_check_branch
    %90 = sbr.rel (0) target = $region21
  $region20: #{_l2_norm_diff.1} parent=0 // pred_region
    _
  $region21: #{_l2_norm_diff.1} parent=0 // pred_fallthru
    _

</llo_original>
